<compile_context>
chip_gen: v7x
topology: tpu7x:2x2x1
jax: 0.10.0
libtpu: 0.0.40
codegen_flags: <defaults>
</compile_context>

<pallas_src>
import functools
import math

import jax
import jax.numpy as jnp
from jax.experimental import pallas as pl
from jax.experimental.pallas import tpu as pltpu


def _round_up(x, m):
    return ((x + m - 1) // m) * m


def attn_head_kernel(x_ref, wvw_ref, wvb_ref, dw_ref, db_ref, o_ref, *, hidden):
    """One batch tile: fused W|V projection -> tanh/softmax -> a*v -> dense -> relu."""
    x = x_ref[...].astype(jnp.bfloat16)                        # (tb, F) bf16

    # Fused W|V projection: single MXU pass over the x tile, f32 accumulation.
    wv = jnp.dot(x, wvw_ref[...], preferred_element_type=jnp.float32) + wvb_ref[...]
    s = jnp.tanh(wv[:, :hidden])                               # attention logits (tb, H)
    v = wv[:, hidden:]                                         # V(x)             (tb, H)

    # Softmax over the (unpadded) hidden axis.
    m = jnp.max(s, axis=-1, keepdims=True)
    e = jnp.exp(s - m)
    a = e * pl.reciprocal(jnp.sum(e, axis=-1, keepdims=True), approx=True)

    # context vector -> dense -> relu
    c = (a * v).astype(jnp.bfloat16)                           # (tb, H)
    out = jnp.dot(c, dw_ref[...], preferred_element_type=jnp.float32) + db_ref[...]
    o_ref[...] = jnp.maximum(out, 0.0).astype(o_ref.dtype)


def pack_params(params):
    """One-time packing of nn.Linear params (stored pre-transposed (in, out)).

    Done once at init so the per-call path performs no HBM passes over the
    weights (the old version re-padded / concatenated / cast them every call).
    """
    f32, bf16 = jnp.float32, jnp.bfloat16
    return dict(
        wv_w=jnp.concatenate([params["W_w"], params["V_w"]], axis=1).astype(bf16),  # (F, 2H)
        wv_b=jnp.concatenate([params["W_b"], params["V_b"]], axis=1).astype(f32),   # (1, 2H)
        d_w=params["D_w"].astype(bf16),                                             # (H, H)
        d_b=params["D_b"].astype(f32),                                              # (1, H)
    )


def attention_head(x, packed, *, tile_b=512):
    """x: (B, F) float32.  packed: output of pack_params()."""
    B, F = x.shape
    H = packed["d_w"].shape[0]

    # ---- batch tile selection --------------------------------------------------
    tb = min(tile_b, _round_up(B, 8))          # f32 sublane multiple
    if pl.cdiv(B, tb) < 2 and B > 8:           # keep >= 2 grid steps (v7x has 2 TCs)
        tb = _round_up(pl.cdiv(B, 2), 8)

    # ---- VMEM budget (v7x has only 64 MiB per TensorCore) -----------------------
    weight_bytes = sum(int(w.size) * w.dtype.itemsize for w in packed.values())

    def step_bytes(t):
        x_buf = 2 * t * F * 4                  # double-buffered x tile (f32)
        o_buf = 2 * t * H * 4                  # double-buffered out tile (f32)
        tmp = 10 * t * H * 4                   # rough in-kernel f32/bf16 temporaries
        return x_buf + o_buf + tmp

    VMEM_BUDGET = 48 * 1024 * 1024             # headroom below v7x's 64 MiB/TC
    while tb > 8 and weight_bytes + step_bytes(tb) > VMEM_BUDGET:
        tb = max(8, _round_up(tb // 2, 8))
    # TODO(synk): if the resident W|V / dense weights alone exceed the budget
    # (very large F*H on v7x), fall back to K-tiled weights with a pl.when-guarded
    # f32 accumulator instead of whole-array VMEM residency.
    vmem_limit = int(min(VMEM_BUDGET,
                         max(2 * (weight_bytes + step_bytes(tb)), 16 * 1024 * 1024)))

    grid = (pl.cdiv(B, tb),)
    kernel = functools.partial(attn_head_kernel, hidden=H)

    # Grid-invariant weights/biases: whole-array resident in VMEM (single DMA,
    # no per-step double-buffering).
    resident = pl.BlockSpec(memory_space=pltpu.MemorySpace.VMEM)

    cost = pl.CostEstimate(
        flops=2 * B * (F * 2 * H + H * H),
        transcendentals=2 * B * H,                        # tanh + exp
        bytes_accessed=x.size * 4 + weight_bytes + B * H * 4,
    )

    return pl.pallas_call(
        kernel,
        out_shape=jax.ShapeDtypeStruct((B, H), jnp.float32),
        grid=grid,
        in_specs=[
            pl.BlockSpec((tb, F), lambda i: (i, 0)),      # x tile (full-extent K)
            resident,                                     # fused W|V weight (F, 2H) bf16
            resident,                                     # fused W|V bias   (1, 2H) f32
            resident,                                     # dense weight     (H, H)  bf16
            resident,                                     # dense bias       (1, H)  f32
        ],
        out_specs=pl.BlockSpec((tb, H), lambda i: (i, 0)),
        compiler_params=pltpu.CompilerParams(
            dimension_semantics=("parallel",),
            vmem_limit_bytes=vmem_limit,
        ),
        cost_estimate=cost,
    )(x, packed["wv_w"], packed["wv_b"], packed["d_w"], packed["d_b"])


def init_params(key, in_features, hidden_dim, dtype=jnp.float32):
    """Deterministic nn.Linear-style init. Weights stored pre-transposed (in, out)."""
    ks = jax.random.split(key, 6)

    def linear(kw, kb, fan_in, fan_out):
        bound = 1.0 / math.sqrt(fan_in)
        w = jax.random.uniform(kw, (fan_in, fan_out), dtype, -bound, bound)
        b = jax.random.uniform(kb, (1, fan_out), dtype, -bound, bound)
        return w, b

    W_w, W_b = linear(ks[0], ks[1], in_features, hidden_dim)
    V_w, V_b = linear(ks[2], ks[3], in_features, hidden_dim)
    D_w, D_b = linear(ks[4], ks[5], hidden_dim, hidden_dim)
    return dict(W_w=W_w, W_b=W_b, V_w=V_w, V_b=V_b, D_w=D_w, D_b=D_b)


def reference(x, p):
    s = jnp.tanh(x @ p["W_w"] + p["W_b"])
    a = jax.nn.softmax(s, axis=1)
    v = x @ p["V_w"] + p["V_b"]
    c = a * v
    return jax.nn.relu(c @ p["D_w"] + p["D_b"])


if __name__ == "__main__":
    key = jax.random.PRNGKey(0)
    k_x, k_p = jax.random.split(key)

    B, F_IN, HID = 16, 32, 32
    x = jax.random.normal(k_x, (B, F_IN), jnp.float32)
    params = init_params(k_p, F_IN, HID)
    packed = pack_params(params)            # one-time weight packing (hoisted out of fwd)

    fwd = jax.jit(attention_head)
    out = jax.block_until_ready(fwd(x, packed))

    ref = reference(x, params)
    assert out.shape == (B, HID)
    # bf16 MXU operands + approx reciprocal => looser tolerance than the pure-f32 path.
    assert jnp.allclose(out, ref, atol=2e-2, rtol=2e-2), "mismatch vs reference"

    print("KERNEL_OK")
</pallas_src>

<mosaic_0001>
module attributes {stable_mosaic.version = 11 : i64} {
  func.func @attn_head_kernel(%arg0: i32, %arg1: memref<8x32xf32, #tpu.memory_space<vmem>>, %arg2: memref<32x64xbf16, #tpu.memory_space<vmem>>, %arg3: memref<1x64xf32, #tpu.memory_space<vmem>>, %arg4: memref<32x32xbf16, #tpu.memory_space<vmem>>, %arg5: memref<1x32xf32, #tpu.memory_space<vmem>>, %arg6: memref<8x32xf32, #tpu.memory_space<vmem>>) attributes {dimension_semantics = [#tpu.dimension_semantics<parallel>], iteration_bounds = array<i64: 2>, scalar_prefetch = 0 : i64, scratch_operands = 0 : i64, tpu.core_type = #tpu.core_type<tc>, window_params = [{transform_indices = @transform_0, window_bounds = array<i64: 8, 32>}, {pipeline_mode = #tpu.pipeline_mode<synchronous>, transform_indices = @transform_1, window_bounds = array<i64: 32, 64>}, {pipeline_mode = #tpu.pipeline_mode<synchronous>, transform_indices = @transform_2, window_bounds = array<i64: 1, 64>}, {pipeline_mode = #tpu.pipeline_mode<synchronous>, transform_indices = @transform_3, window_bounds = array<i64: 32, 32>}, {pipeline_mode = #tpu.pipeline_mode<synchronous>, transform_indices = @transform_4, window_bounds = array<i64: 1, 32>}, {transform_indices = @transform_5, window_bounds = array<i64: 8, 32>}]} {
    %c0 = arith.constant 0 : index
    %c0_0 = arith.constant 0 : index
    %0 = vector.load %arg1[%c0, %c0_0] : memref<8x32xf32, #tpu.memory_space<vmem>>, vector<8x32xf32>
    %1 = arith.truncf %0 : vector<8x32xf32> to vector<8x32xbf16>
    %c0_1 = arith.constant 0 : index
    %c0_2 = arith.constant 0 : index
    %2 = vector.load %arg2[%c0_1, %c0_2] : memref<32x64xbf16, #tpu.memory_space<vmem>>, vector<32x64xbf16>
    %cst = arith.constant dense<0.000000e+00> : vector<8x64xf32>
    %3 = tpu.matmul %1, %2, %cst {dimension_numbers = #tpu.dot_dimension_numbers<[1], [0], [0], [1], [0, 0, 1, 1], [], []>} : vector<8x32xbf16>, vector<32x64xbf16>, vector<8x64xf32> -> vector<8x64xf32>
    %c0_3 = arith.constant 0 : index
    %c0_4 = arith.constant 0 : index
    %4 = vector.load %arg3[%c0_3, %c0_4] : memref<1x64xf32, #tpu.memory_space<vmem>>, vector<1x64xf32>
    %5 = vector.broadcast %4 : vector<1x64xf32> to vector<8x64xf32>
    %6 = arith.addf %3, %5 : vector<8x64xf32>
    %7 = vector.extract_strided_slice %6 {offsets = [0, 0], sizes = [8, 32], strides = [1, 1]} : vector<8x64xf32> to vector<8x32xf32>
    %8 = math.tanh %7 : vector<8x32xf32>
    %9 = vector.extract_strided_slice %6 {offsets = [0, 32], sizes = [8, 32], strides = [1, 1]} : vector<8x64xf32> to vector<8x32xf32>
    %cst_5 = arith.constant dense<0xFF800000> : vector<8xf32>
    %10 = vector.multi_reduction <maximumf>, %8, %cst_5 [1] : vector<8x32xf32> to vector<8xf32>
    %11 = vector.shape_cast %10 : vector<8xf32> to vector<8x1xf32>
    %12 = vector.broadcast %11 : vector<8x1xf32> to vector<8x32xf32>
    %13 = arith.subf %8, %12 : vector<8x32xf32>
    %14 = math.exp %13 : vector<8x32xf32>
    %cst_6 = arith.constant dense<0.000000e+00> : vector<8xf32>
    %15 = vector.multi_reduction <add>, %14, %cst_6 [1] : vector<8x32xf32> to vector<8xf32>
    %16 = vector.shape_cast %15 : vector<8xf32> to vector<8x1xf32>
    %17 = tpu.reciprocal %16 {approx = true} : vector<8x1xf32> -> vector<8x1xf32>
    %18 = vector.broadcast %17 : vector<8x1xf32> to vector<8x32xf32>
    %19 = arith.mulf %14, %18 : vector<8x32xf32>
    %20 = arith.mulf %19, %9 : vector<8x32xf32>
    %21 = arith.truncf %20 : vector<8x32xf32> to vector<8x32xbf16>
    %c0_7 = arith.constant 0 : index
    %c0_8 = arith.constant 0 : index
    %22 = vector.load %arg4[%c0_7, %c0_8] : memref<32x32xbf16, #tpu.memory_space<vmem>>, vector<32x32xbf16>
    %cst_9 = arith.constant dense<0.000000e+00> : vector<8x32xf32>
    %23 = tpu.matmul %21, %22, %cst_9 {dimension_numbers = #tpu.dot_dimension_numbers<[1], [0], [0], [1], [0, 0, 1, 1], [], []>} : vector<8x32xbf16>, vector<32x32xbf16>, vector<8x32xf32> -> vector<8x32xf32>
    %c0_10 = arith.constant 0 : index
    %c0_11 = arith.constant 0 : index
    %24 = vector.load %arg5[%c0_10, %c0_11] : memref<1x32xf32, #tpu.memory_space<vmem>>, vector<1x32xf32>
    %25 = vector.broadcast %24 : vector<1x32xf32> to vector<8x32xf32>
    %26 = arith.addf %23, %25 : vector<8x32xf32>
    %cst_12 = arith.constant 0.000000e+00 : f32
    %27 = vector.broadcast %cst_12 : f32 to vector<8x32xf32>
    %28 = arith.maximumf %26, %27 : vector<8x32xf32>
    %c0_13 = arith.constant 0 : index
    %c0_14 = arith.constant 0 : index
    %29 = vector.load %arg6[%c0_13, %c0_14] : memref<8x32xf32, #tpu.memory_space<vmem>>, vector<8x32xf32>
    tpu.vector_store %arg6[%c0_13, %c0_14], %28 {strides = array<i32>} : memref<8x32xf32, #tpu.memory_space<vmem>>, vector<8x32xf32>,
    return
  }
  func.func @transform_0(%arg0: i32) -> (i32, i32) {
    %c0_i32 = arith.constant 0 : i32
    %c0_i32_0 = arith.constant 0 : i32
    return %arg0, %c0_i32 : i32, i32
  }
  func.func @transform_1(%arg0: i32) -> (i32, i32) {
    %c0_i32 = arith.constant 0 : i32
    %c0_i32_0 = arith.constant 0 : i32
    %c0_i32_1 = arith.constant 0 : i32
    return %c0_i32, %c0_i32_0 : i32, i32
  }
  func.func @transform_2(%arg0: i32) -> (i32, i32) {
    %c0_i32 = arith.constant 0 : i32
    %c0_i32_0 = arith.constant 0 : i32
    %c0_i32_1 = arith.constant 0 : i32
    return %c0_i32, %c0_i32_0 : i32, i32
  }
  func.func @transform_3(%arg0: i32) -> (i32, i32) {
    %c0_i32 = arith.constant 0 : i32
    %c0_i32_0 = arith.constant 0 : i32
    %c0_i32_1 = arith.constant 0 : i32
    return %c0_i32, %c0_i32_0 : i32, i32
  }
  func.func @transform_4(%arg0: i32) -> (i32, i32) {
    %c0_i32 = arith.constant 0 : i32
    %c0_i32_0 = arith.constant 0 : i32
    %c0_i32_1 = arith.constant 0 : i32
    return %c0_i32, %c0_i32_0 : i32, i32
  }
  func.func @transform_5(%arg0: i32) -> (i32, i32) {
    %c0_i32 = arith.constant 0 : i32
    %c0_i32_0 = arith.constant 0 : i32
    return %arg0, %c0_i32 : i32, i32
  }
}

</mosaic_0001>

<llo_original>
// kernel: attention_head.1
$region0: #{attention_head.1}
  #allocation0 [shape = 'u32[]', space=smem, size = 0x4, offset = 0x4, fixed_abs, tag = 'smem constant byte address 0x4 - core index']
  #allocation1 [shape = 'u32[144,128]{1,0:T(1,128)}', space=vmem, size = 0x12000, scoped, tag = 'internal scratch']
  %s0 = inlined_call_operand.hbm [shape: f32[16,32], index: 0, kind: input, shape index: {}]
  %s1 = inlined_call_operand.hbm [shape: bf16[32,64], index: 1, kind: input, shape index: {}]
  %s2 = inlined_call_operand.vmem [shape: f32[1,64], index: 2, kind: input, shape index: {}]
  %s3 = inlined_call_operand.hbm [shape: bf16[32,32], index: 3, kind: input, shape index: {}]
  %s4 = inlined_call_operand.vmem [shape: f32[1,32], index: 4, kind: input, shape index: {}]
  %s5 = inlined_call_operand.hbm [shape: f32[16,32], index: 5, kind: output, shape index: {}]
  %s6 = sld [smem:[#allocation0]]
  $region65: #{attention_head.1} parent=0
    _
  %s8 = ssub.s32 1, %s6
  %s9 = scalar_select 0, %s8, %s6
  $region1: #{attention_head.1} parent=0
    #allocation2 [shape = 'u8[8192]{0}', space=vmem, size = 0x2000, scoped, tag = 'input window, operand 0']
    #allocation3 [shape = 's32[2]{0}', space=sflag, size = 0x8, scoped, tag = 'scoped memory for attention_head.1']
    #allocation4 [shape = 's32[2]{0}', space=sflag, size = 0x8, scoped, tag = 'scoped memory for attention_head.1']
    #allocation5 [shape = 'u8[8192]{0}', space=vmem, size = 0x2000, scoped, tag = 'input window, operand 1, single buffered']
    #allocation6 [shape = 's32[1]{0}', space=sflag, size = 0x4, scoped, tag = 'scoped memory for attention_head.1']
    #allocation7 [shape = 'u8[8192]{0}', space=vmem, size = 0x2000, scoped, tag = 'input window, operand 3, single buffered']
    #allocation8 [shape = 'u8[8192]{0}', space=vmem, size = 0x2000, scoped, tag = 'output window, operand 0']
    %10 = vsyncpa [#allocation3], 0
    %s11 = scalar_lea.sflag [#allocation3], 1
    %12 = vsyncpa %s11, 0
    %13 = vsyncpa [#allocation6], 0
    %14 = vsyncpa [#allocation4], 0
    %s15 = scalar_lea.sflag [#allocation4], 1
    %16 = vsyncpa %s15, 0
    loop: start=0, step=1, limit=4
    $region2: #{attention_head.1} parent=1 // loop_pre_header
      _
    $region3: #{attention_head.1} parent=1 // loop_header
      %s18 = sphi 0, %s22
      %p19 = scmp.ge.s32.totalorder %s18, 4
      %s28 = sphi 0, %s30
      %s31 = sphi 0, %s28
      %s32 = sphi 0, %s31
      %s48 = sphi 0, %s32
      %s52 = sphi 0, %s52
      %s54 = sphi 0, %s52
      %s55 = sphi 0, %s54
      %s69 = sphi 0, %s55
      %s73 = sphi 0, %s73
      %s75 = sphi 0, %s73
      %s76 = sphi 0, %s75
      %s90 = sphi 0, %s76
      %s94 = sphi 0, %s94
      %s96 = sphi 0, %s94
      %s97 = sphi 0, %s96
      %s111 = sphi 0, %s97
      %s115 = sphi 0, %s115
      %s117 = sphi 0, %s115
      %s118 = sphi 0, %s117
      %s132 = sphi 0, %s118
      %s138 = sphi 0, %s140
      %s141 = sphi 0, %s138
      %s142 = sphi 0, %s141
      %s158 = sphi 0, %s142
    $region4: #{attention_head.1} parent=1 // loop_header_branch
      %21 = sbr.rel (%p19) target = $region8
    $region5: #{attention_head.1} parent=1 // loop_body
      %s23 = ssub.s32 %s18, 1
      %s24 = ssub.s32 %s18, 2
      %s25 = sadd.s32 %s18, 1
      %s26 = ssub.s32 %s18, %s25
      %p27 = scmp.eq.s32.totalorder %s26, 0
      %s29 = sadd.s32 %s28, 1
      %s30 = scalar_select %p27, %s28, %s29
      %p33 = pneg %p27
      %p34 = scmp.eq.s32.totalorder %s18, 1
      %p35 = por %p33, %p34
      %p36 = scmp.ne.s32.totalorder %s28, %s31
      %p37 = scmp.eq.s32.totalorder %s18, 0
      %p38 = por %p36, %p37
      %p39 = scmp.ne.s32.totalorder %s28, %s31
      %p40 = scmp.eq.s32.totalorder %s23, 1
      %p41 = por %p39, %p40
      %p42 = scmp.ne.s32.totalorder %s31, %s32
      %p43 = scmp.eq.s32.totalorder %s23, 0
      %p44 = por %p42, %p43
      %p45 = scmp.ne.s32.totalorder %s31, %s32
      %p46 = scmp.eq.s32.totalorder %s24, 1
      %p47 = por %p45, %p46
      %p49 = scmp.ne.s32.totalorder %s32, %s48
      %p50 = scmp.eq.s32.totalorder %s24, 0
      %p51 = por %p49, %p50
      %s53 = sadd.s32 %s52, 1
      %p56 = scmp.eq.s32.totalorder %s18, 1
      %p57 = scmp.ne.s32.totalorder %s52, %s54
      %p58 = scmp.eq.s32.totalorder %s18, 0
      %p59 = por %p57, %p58
      %p60 = scmp.ne.s32.totalorder %s52, %s54
      %p61 = scmp.eq.s32.totalorder %s23, 1
      %p62 = por %p60, %p61
      %p63 = scmp.ne.s32.totalorder %s54, %s55
      %p64 = scmp.eq.s32.totalorder %s23, 0
      %p65 = por %p63, %p64
      %p66 = scmp.ne.s32.totalorder %s54, %s55
      %p67 = scmp.eq.s32.totalorder %s24, 1
      %p68 = por %p66, %p67
      %p70 = scmp.ne.s32.totalorder %s55, %s69
      %p71 = scmp.eq.s32.totalorder %s24, 0
      %p72 = por %p70, %p71
      %s74 = sadd.s32 %s73, 1
      %p77 = scmp.eq.s32.totalorder %s18, 1
      %p78 = scmp.ne.s32.totalorder %s73, %s75
      %p79 = scmp.eq.s32.totalorder %s18, 0
      %p80 = por %p78, %p79
      %p81 = scmp.ne.s32.totalorder %s73, %s75
      %p82 = scmp.eq.s32.totalorder %s23, 1
      %p83 = por %p81, %p82
      %p84 = scmp.ne.s32.totalorder %s75, %s76
      %p85 = scmp.eq.s32.totalorder %s23, 0
      %p86 = por %p84, %p85
      %p87 = scmp.ne.s32.totalorder %s75, %s76
      %p88 = scmp.eq.s32.totalorder %s24, 1
      %p89 = por %p87, %p88
      %p91 = scmp.ne.s32.totalorder %s76, %s90
      %p92 = scmp.eq.s32.totalorder %s24, 0
      %p93 = por %p91, %p92
      %s95 = sadd.s32 %s94, 1
      %p98 = scmp.eq.s32.totalorder %s18, 1
      %p99 = scmp.ne.s32.totalorder %s94, %s96
      %p100 = scmp.eq.s32.totalorder %s18, 0
      %p101 = por %p99, %p100
      %p102 = scmp.ne.s32.totalorder %s94, %s96
      %p103 = scmp.eq.s32.totalorder %s23, 1
      %p104 = por %p102, %p103
      %p105 = scmp.ne.s32.totalorder %s96, %s97
      %p106 = scmp.eq.s32.totalorder %s23, 0
      %p107 = por %p105, %p106
      %p108 = scmp.ne.s32.totalorder %s96, %s97
      %p109 = scmp.eq.s32.totalorder %s24, 1
      %p110 = por %p108, %p109
      %p112 = scmp.ne.s32.totalorder %s97, %s111
      %p113 = scmp.eq.s32.totalorder %s24, 0
      %p114 = por %p112, %p113
      %s116 = sadd.s32 %s115, 1
      %p119 = scmp.eq.s32.totalorder %s18, 1
      %p120 = scmp.ne.s32.totalorder %s115, %s117
      %p121 = scmp.eq.s32.totalorder %s18, 0
      %p122 = por %p120, %p121
      %p123 = scmp.ne.s32.totalorder %s115, %s117
      %p124 = scmp.eq.s32.totalorder %s23, 1
      %p125 = por %p123, %p124
      %p126 = scmp.ne.s32.totalorder %s117, %s118
      %p127 = scmp.eq.s32.totalorder %s23, 0
      %p128 = por %p126, %p127
      %p129 = scmp.ne.s32.totalorder %s117, %s118
      %p130 = scmp.eq.s32.totalorder %s24, 1
      %p131 = por %p129, %p130
      %p133 = scmp.ne.s32.totalorder %s118, %s132
      %p134 = scmp.eq.s32.totalorder %s24, 0
      %p135 = por %p133, %p134
      %s136 = ssub.s32 %s18, %s25
      %p137 = scmp.eq.s32.totalorder %s136, 0
      %s139 = sadd.s32 %s138, 1
      %s140 = scalar_select %p137, %s138, %s139
      %p143 = pneg %p137
      %p144 = scmp.eq.s32.totalorder %s18, 1
      %p145 = por %p143, %p144
      %p146 = scmp.ne.s32.totalorder %s138, %s141
      %p147 = scmp.eq.s32.totalorder %s18, 0
      %p148 = por %p146, %p147
      %p149 = scmp.ne.s32.totalorder %s138, %s141
      %p150 = scmp.eq.s32.totalorder %s23, 1
      %p151 = por %p149, %p150
      %p152 = scmp.ne.s32.totalorder %s141, %s142
      %p153 = scmp.eq.s32.totalorder %s23, 0
      %p154 = por %p152, %p153
      %p155 = scmp.ne.s32.totalorder %s141, %s142
      %p156 = scmp.eq.s32.totalorder %s24, 1
      %p157 = por %p155, %p156
      %p159 = scmp.ne.s32.totalorder %s142, %s158
      %p160 = scmp.eq.s32.totalorder %s24, 0
      %p161 = por %p159, %p160
      %p162 = scmp.le.s32.totalorder 1, %s18
      %p163 = scmp.lt.s32.totalorder %s18, 3
      %p164 = pnand %p162, %p163
      %p165 = pneg %p164
      // Predicated region
      $region9: #{attention_head.1} parent=5 // pred_check
        _
      $region10: #{attention_head.1} parent=5 // pred_check_branch
        %167 = sbr.rel (%p164) target = $region12
      $region11: #{attention_head.1} parent=5 // pred_region
        %s168 = ssub.s32 %s18, 1
        // Predicated region
        $region13: #{attention_head.1} parent=11 // pred_check
          %p169 = pneg %p65
        $region14: #{attention_head.1} parent=11 // pred_check_branch
          %171 = sbr.rel (%p169) target = $region16
        $region15: #{attention_head.1} parent=11 // pred_region
          %s173 = ssub.s32 256, 256
          %174 = vsyncadd [#allocation6], %s173
          %s175 = sshll.u32 [#allocation5], 4
          %s176 = int_to_ptr.vmem [resolvable:$true] %s175
          %181 = dma.hbm_to_vmem [thread:$0]  %s1, 256, %s176, [#allocation6], 64, 64, 4
        $region16: #{attention_head.1} parent=11 // pred_fallthru
          _
        // Predicated region
        $region17: #{attention_head.1} parent=11 // pred_check
          %p182 = pneg %p86
        $region18: #{attention_head.1} parent=11 // pred_check_branch
          %184 = sbr.rel (%p182) target = $region20
        $region19: #{attention_head.1} parent=11 // pred_region
          _
        $region20: #{attention_head.1} parent=11 // pred_fallthru
          _
        // Predicated region
        $region21: #{attention_head.1} parent=11 // pred_check
          %p185 = pneg %p107
        $region22: #{attention_head.1} parent=11 // pred_check_branch
          %187 = sbr.rel (%p185) target = $region24
        $region23: #{attention_head.1} parent=11 // pred_region
          %s189 = ssub.s32 256, 256
          %190 = vsyncadd [#allocation6], %s189
          %s191 = sshll.u32 [#allocation7], 4
          %s192 = int_to_ptr.vmem [resolvable:$true] %s191
          %197 = dma.hbm_to_vmem [thread:$0]  %s3, 256, %s192, [#allocation6], 64, 64, 4
        $region24: #{attention_head.1} parent=11 // pred_fallthru
          _
        // Predicated region
        $region25: #{attention_head.1} parent=11 // pred_check
          %p198 = pneg %p128
        $region26: #{attention_head.1} parent=11 // pred_check_branch
          %200 = sbr.rel (%p198) target = $region28
        $region27: #{attention_head.1} parent=11 // pred_region
          _
        $region28: #{attention_head.1} parent=11 // pred_fallthru
          _
      $region12: #{attention_head.1} parent=5 // pred_fallthru
        _
      %p201 = scmp.lt.s32.totalorder %s18, 2
      // Predicated region
      $region29: #{attention_head.1} parent=5 // pred_check
        %p202 = pneg %p201
      $region30: #{attention_head.1} parent=5 // pred_check_branch
        %204 = sbr.rel (%p202) target = $region32
      $region31: #{attention_head.1} parent=5 // pred_region
        // Predicated region
        $region33: #{attention_head.1} parent=31 // pred_check
          %p205 = pneg %p38
        $region34: #{attention_head.1} parent=31 // pred_check_branch
          %207 = sbr.rel (%p205) target = $region36
        $region35: #{attention_head.1} parent=31 // pred_region
          %s208 = sand.u32 %s28, 1
          %s209 = scalar_lea.sflag [#allocation3], %s208
          %s210 = sand.u32 %s28, 1
          %s211 = smul.addr %s210, 8
          %s212 = scalar_lea.vmem [#allocation2], %s211
          %s214 = ssub.s32 128, 128
          %215 = vsyncadd %s209, %s214
          %s216 = smul.addr %s18, 128
          %s217 = scalar_lea.hbm %s0, %s216
          %s219 = sshll.u32 %s212, 4
          %s220 = int_to_ptr.vmem [resolvable:$true] %s219
          %222 = dma.hbm_to_vmem [thread:$0]  %s217, 128, %s220, %s209
        $region36: #{attention_head.1} parent=31 // pred_fallthru
          _
      $region32: #{attention_head.1} parent=5 // pred_fallthru
        _
      %p223 = scmp.le.s32.totalorder 1, %s18
      %p224 = scmp.lt.s32.totalorder %s18, 3
      %p225 = pnand %p223, %p224
      %p226 = pneg %p225
      // Predicated region
      $region37: #{attention_head.1} parent=5 // pred_check
        _
      $region38: #{attention_head.1} parent=5 // pred_check_branch
        %228 = sbr.rel (%p225) target = $region40
      $region39: #{attention_head.1} parent=5 // pred_region
        %s229 = ssub.s32 %s18, 1
        %s230 = sand.u32 %s31, 1
        %s231 = scalar_lea.sflag [#allocation3], %s230
        %s232 = sand.u32 %s31, 1
        %s233 = smul.addr %s232, 8
        %s234 = scalar_lea.vmem [#allocation2], %s233
        // Predicated region
        $region41: #{attention_head.1} parent=39 // pred_check
          %p235 = pneg %p44
        $region42: #{attention_head.1} parent=39 // pred_check_branch
          %237 = sbr.rel (%p235) target = $region44
        $region43: #{attention_head.1} parent=39 // pred_region
          %238 = dma.done %s231, 128
        $region44: #{attention_head.1} parent=39 // pred_fallthru
          _
        // Predicated region
        $region45: #{attention_head.1} parent=39 // pred_check
          %p239 = pneg %p65
        $region46: #{attention_head.1} parent=39 // pred_check_branch
          %241 = sbr.rel (%p239) target = $region48
        $region47: #{attention_head.1} parent=39 // pred_region
          %242 = dma.done [#allocation6], 256
        $region48: #{attention_head.1} parent=39 // pred_fallthru
          _
        // Predicated region
        $region49: #{attention_head.1} parent=39 // pred_check
          %p243 = pneg %p107
        $region50: #{attention_head.1} parent=39 // pred_check_branch
          %245 = sbr.rel (%p243) target = $region52
        $region51: #{attention_head.1} parent=39 // pred_region
          %246 = dma.done [#allocation6], 256
        $region52: #{attention_head.1} parent=39 // pred_fallthru
          _
        %s247 = sand.u32 %s31, 1
        %s248 = scalar_lea.sflag [#allocation3], %s247
        %s249 = sand.u32 %s31, 1
        %s250 = smul.addr %s249, 8
        %s251 = scalar_lea.vmem [#allocation2], %s250
        %p252 = pneg %p44
        %p253 = pneg %p41
        %p254 = pneg %p65
        %p255 = pneg %p62
        %p256 = pneg %p86
        %p257 = pneg %p83
        %p258 = pneg %p107
        %p259 = pneg %p104
        %p260 = pneg %p128
        %p261 = pneg %p125
        %p262 = pneg %p154
        %p263 = pneg %p151
        %s264 = sand.u32 %s141, 1
        %s265 = scalar_lea.sflag [#allocation4], %s264
        %s266 = sand.u32 %s141, 1
        %s267 = smul.addr %s266, 8
        %s268 = scalar_lea.vmem [#allocation8], %s267
        %v270 = vld [vmem:[%s234] sm:$0xff]
        %v271 = vpack.c.bf16 %v270, %v270
        %v272 = vld [vmem:[#allocation5] sm:$0xf]
        %v273 = vld [vmem:[#allocation5 + $0x4] sm:$0xf]
        %v274 = vld [vmem:[#allocation5 + $0x8] sm:$0xf]
        %v275 = vld [vmem:[#allocation5 + $0xc] sm:$0xf]
        %v276 = vld [vmem:[%s2] sm:$0x1]
        %v278 = vlaneseq
        %v279 = vshrl.u32 %v278, 7
        %v280 = vsub.s32 0, %v279
        %v281 = vrot.slane %v276, %v280
        %v287 = vunpack.c.l.b16 %v272
        %v288 = vunpack.c.l.b16 %v273
        %v289 = vunpack.c.l.b16 %v274
        %v290 = vunpack.c.l.b16 %v275
        %v291 = vpack.c.b16 %v288, %v287
        %v292 = vpack.c.b16 %v290, %v289
        %vm295 = vcmask 261120
        %v297 = vsel %vm295, %v271, 0
        %299 = vmatprep.subr.bf16.mxu0 0
        %300 = vmatpush1.bf16.msra.mxu0 %v291
        %301 = vmatprep.subr.bf16.mxu0 0
        %302 = vmatpush1.bf16.msra.mxu0 %v292
        %303 = vmatprep.subr.bf16.mxu0 0
        %304 = vmatpush1.bf16.msra.mxu0 0
        %305 = vmatprep.subr.bf16.mxu0 0
        %306 = vmatpush1.bf16.msra.mxu0 0
        %307 = vmatprep.subr.bf16.mxu0 0
        %308 = vmatpush1.bf16.msra.mxu0 0
        %309 = vmatprep.subr.bf16.mxu0 0
        %310 = vmatpush1.bf16.msra.mxu0 0
        %311 = vmatprep.subr.bf16.mxu0 0
        %312 = vmatpush1.bf16.msra.mxu0 0
        %313 = vmatprep.subr.bf16.mxu0 0
        %314 = vmatpush1.bf16.msra.mxu0 0
        %315 = vmatprep.subr.bf16.mxu0 0
        %316 = vmatpush1.bf16.msra.mxu0 0
        %317 = vmatprep.subr.bf16.mxu0 0
        %318 = vmatpush1.bf16.msra.mxu0 0
        %319 = vmatprep.subr.bf16.mxu0 0
        %320 = vmatpush1.bf16.msra.mxu0 0
        %321 = vmatprep.subr.bf16.mxu0 0
        %322 = vmatpush1.bf16.msra.mxu0 0
        %323 = vmatprep.subr.bf16.mxu0 0
        %324 = vmatpush1.bf16.msra.mxu0 0
        %325 = vmatprep.subr.bf16.mxu0 0
        %326 = vmatpush1.bf16.msra.mxu0 0
        %327 = vmatprep.subr.bf16.mxu0 0
        %328 = vmatpush1.bf16.msra.mxu0 0
        %329 = vmatprep.subr.bf16.mxu0 0
        %330 = vmatpush1.bf16.msra.mxu0 0
        %331 = vmatprep.mubr.bf16.mxu0 0
        %332 = vmatmul.mubr.bf16.gmra.mrb[0].mxu0 %v297
        %v333 = vpop.f32.mrb[0].mxu0
        %v334 = vadd.f32 %v281, %v333
        %v335 = vpop.f32.mrb[0].mxu0
        %v336 = vpop.f32.mrb[0].mxu0
        %v337 = vpop.f32.mrb[0].mxu0
        %338 = vdwg.mxu0
        %v339 = vtanh.pop %v334
        %v340 = vsel %vm295, %v339, -inf
        %341 = vmax.xlane.f32.xlu0 %v340
        %v342 = vpop.xlane.xlu0 %341
        %v343 = vsub.f32 %v339, %v342
        %v344 = vmul.f32 %v343, 1.442695
        %v345 = vpow.pop %v344
        %v346 = vsel %vm295, %v345, 0.0
        %347 = vadd.xlane.f32.xlu0 %v346
        %v348 = vpop.xlane.xlu0 %347
        %v349 = vrcp.pop %v348
        %v350 = vmul.f32 %v345, %v349
        %352 = vrot.lane.b32.xlu0 %v334, 96
        %v353 = vpop.permute.xlu0 %352
        %v355 = vmul.f32 %v350, %v353
        %v356 = vpack.c.bf16 %v355, %v355
        %v357 = vld [vmem:[#allocation7] sm:$0xf]
        %v358 = vld [vmem:[#allocation7 + $0x4] sm:$0xf]
        %v359 = vld [vmem:[#allocation7 + $0x8] sm:$0xf]
        %v360 = vld [vmem:[#allocation7 + $0xc] sm:$0xf]
        %v361 = vld [vmem:[%s4] sm:$0x1]
        %v363 = vlaneseq
        %v364 = vshrl.u32 %v363, 7
        %v365 = vsub.s32 0, %v364
        %v366 = vrot.slane %v361, %v365
        %v372 = vunpack.c.l.b16 %v357
        %v373 = vunpack.c.l.b16 %v358
        %v374 = vunpack.c.l.b16 %v359
        %v375 = vunpack.c.l.b16 %v360
        %v376 = vpack.c.b16 %v373, %v372
        %v377 = vpack.c.b16 %v375, %v374
        %v381 = vsel %vm295, %v356, 0
        %383 = vmatprep.subr.bf16.mxu0 0
        %384 = vmatpush1.bf16.msra.mxu0 %v376
        %385 = vmatprep.subr.bf16.mxu0 0
        %386 = vmatpush1.bf16.msra.mxu0 %v377
        %387 = vmatprep.subr.bf16.mxu0 0
        %388 = vmatpush1.bf16.msra.mxu0 0
        %389 = vmatprep.subr.bf16.mxu0 0
        %390 = vmatpush1.bf16.msra.mxu0 0
        %391 = vmatprep.subr.bf16.mxu0 0
        %392 = vmatpush1.bf16.msra.mxu0 0
        %393 = vmatprep.subr.bf16.mxu0 0
        %394 = vmatpush1.bf16.msra.mxu0 0
        %395 = vmatprep.subr.bf16.mxu0 0
        %396 = vmatpush1.bf16.msra.mxu0 0
        %397 = vmatprep.subr.bf16.mxu0 0
        %398 = vmatpush1.bf16.msra.mxu0 0
        %399 = vmatprep.subr.bf16.mxu0 0
        %400 = vmatpush1.bf16.msra.mxu0 0
        %401 = vmatprep.subr.bf16.mxu0 0
        %402 = vmatpush1.bf16.msra.mxu0 0
        %403 = vmatprep.subr.bf16.mxu0 0
        %404 = vmatpush1.bf16.msra.mxu0 0
        %405 = vmatprep.subr.bf16.mxu0 0
        %406 = vmatpush1.bf16.msra.mxu0 0
        %407 = vmatprep.subr.bf16.mxu0 0
        %408 = vmatpush1.bf16.msra.mxu0 0
        %409 = vmatprep.subr.bf16.mxu0 0
        %410 = vmatpush1.bf16.msra.mxu0 0
        %411 = vmatprep.subr.bf16.mxu0 0
        %412 = vmatpush1.bf16.msra.mxu0 0
        %413 = vmatprep.subr.bf16.mxu0 0
        %414 = vmatpush1.bf16.msra.mxu0 0
        %415 = vmatprep.mubr.bf16.mxu0 0
        %416 = vmatmul.mubr.bf16.gmra.mrb[0].mxu0 %v381
        %v417 = vpop.f32.mrb[0].mxu0
        %v418 = vadd.f32 %v366, %v417
        %v419 = vpop.f32.mrb[0].mxu0
        %v420 = vpop.f32.mrb[0].mxu0
        %v421 = vpop.f32.mrb[0].mxu0
        %422 = vdwg.mxu0
        %v423 = vmax.f32 %v418, 0.0
        %424 = vst.msk [vmem:[%s268] sm:$0xff] %vm295, %v423
        %s425 = sand.u32 %s141, 1
        %s426 = scalar_lea.sflag [#allocation4], %s425
        %s427 = sand.u32 %s141, 1
        %s428 = smul.addr %s427, 8
        %s429 = scalar_lea.vmem [#allocation8], %s428
        // Predicated region
        $region53: #{attention_head.1} parent=39 // pred_check
          %p430 = pneg %p151
        $region54: #{attention_head.1} parent=39 // pred_check_branch
          %432 = sbr.rel (%p430) target = $region56
        $region55: #{attention_head.1} parent=39 // pred_region
          %s434 = ssub.s32 128, 128
          %435 = vsyncadd %s426, %s434
          %s436 = smul.addr %s23, 128
          %s437 = scalar_lea.hbm %s5, %s436
          %s439 = sshll.u32 %s429, 4
          %s440 = int_to_ptr.vmem [resolvable:$true] %s439
          %442 = dma.vmem_to_hbm [thread:$0]  %s440, 128, %s437, %s426
        $region56: #{attention_head.1} parent=39 // pred_fallthru
          _
      $region40: #{attention_head.1} parent=5 // pred_fallthru
        _
      %p443 = scmp.le.s32.totalorder 2, %s18
      // Predicated region
      $region57: #{attention_head.1} parent=5 // pred_check
        %p444 = pneg %p443
      $region58: #{attention_head.1} parent=5 // pred_check_branch
        %446 = sbr.rel (%p444) target = $region60
      $region59: #{attention_head.1} parent=5 // pred_region
        %s447 = ssub.s32 %s18, 2
        // Predicated region
        $region61: #{attention_head.1} parent=59 // pred_check
          %p448 = pneg %p157
        $region62: #{attention_head.1} parent=59 // pred_check_branch
          %450 = sbr.rel (%p448) target = $region64
        $region63: #{attention_head.1} parent=59 // pred_region
          %s451 = sand.u32 %s142, 1
          %s452 = scalar_lea.sflag [#allocation4], %s451
          %s453 = sand.u32 %s142, 1
          %s454 = smul.addr %s453, 8
          %s455 = scalar_lea.vmem [#allocation8], %s454
          %456 = dma.done %s452, 128
        $region64: #{attention_head.1} parent=59 // pred_fallthru
          _
      $region60: #{attention_head.1} parent=5 // pred_fallthru
        _
    $region6: #{attention_head.1} parent=1 // loop_footer
      %s22 = sadd.s32 1, %s18
    $region7: #{attention_head.1} parent=1 // loop_footer_branch
      %17 = sbr.rel target = $region3
    $region8: #{attention_head.1} parent=1 // loop_exit
      _
    %457 = vsyncpa [#allocation3], 1
    %s458 = scalar_lea.sflag [#allocation3], 1
    %459 = vsyncpa %s458, 1
    %460 = vsyncpa [#allocation6], 1
    %461 = vsyncpa [#allocation4], 1
    %s462 = scalar_lea.sflag [#allocation4], 1
    %463 = vsyncpa %s462, 1

</llo_original>
